<compile_context>
chip_gen: v5e
topology: v5e:2x2
jax: 0.10.0
libtpu: 0.0.40
codegen_flags: <defaults>
</compile_context>

<pallas_src>
import math
from functools import partial

import jax
import jax.numpy as jnp
from jax.experimental import pallas as pl
from jax.experimental.pallas import tpu as pltpu


# ----------------------------------------------------------------------------
# Helpers
# ----------------------------------------------------------------------------
def _round_up(x: int, m: int) -> int:
    return ((x + m - 1) // m) * m


def _pick_block(n: int, requested: int, min_block: int) -> int:
    """Tokens per grid step: a multiple of min_block, <= requested, and (when
    there is enough work) small enough that the grid has >= 2 steps so both
    v7x TensorCores get balanced work."""
    blk = _round_up(min(requested, max(n, 1)), min_block)
    if pl.cdiv(max(n, 1), blk) < 2 and blk >= 2 * min_block:
        blk = _round_up(blk // 2, min_block)
    return blk


# ----------------------------------------------------------------------------
# Path A kernel: resident table + one-hot MXU gather, one dense store per step
# ----------------------------------------------------------------------------
def _embed_resident_kernel(ids_ref, table_ref, o_ref, *, scale):
    # ids_ref:   (T, 1) int32 block of token ids
    # table_ref: (V, D) full embedding table (resident, constant block index)
    # o_ref:     (T, D) output block
    t, _ = ids_ref.shape
    v, _ = table_ref.shape
    # one_hot[i, j] = (ids[i] == j); gather as a matmul on the idle MXU.
    one_hot = ids_ref[...] == jax.lax.broadcasted_iota(jnp.int32, (t, v), 1)
    rows = jnp.dot(one_hot.astype(table_ref.dtype), table_ref[...],
                   preferred_element_type=jnp.float32)
    o_ref[...] = (rows * scale).astype(o_ref.dtype)


# ----------------------------------------------------------------------------
# Path B kernel: streamed row gather (rows land via data-dependent BlockSpecs),
# each row stored directly into its sublane of the dense output block.
# ----------------------------------------------------------------------------
def _embed_stream_kernel(ids_ref, *refs, rows_per_step: int, scale: float):
    del ids_ref  # consumed only by the data-dependent index_maps (SMEM prefetch)
    row_refs = refs[:rows_per_step]       # each block: (1, 1, D) gathered row
    o_ref = refs[rows_per_step]           # block: (rows_per_step, D)
    for t in range(rows_per_step):        # static unroll; one sublane store per row
        o_ref[pl.ds(t, 1), :] = (row_refs[t][0] * scale).astype(o_ref.dtype)


# ----------------------------------------------------------------------------
# Wrapper
# ----------------------------------------------------------------------------
def embeddings(ids, table, *, tokens_per_step: int = 256, rows_per_step: int = 32,
               resident=None, resident_table_budget_bytes: int = 4 << 20):
    """ids: (...,) integer token indices; table: (vocab, d_model). -> (..., d_model)."""
    V, D = table.shape
    dtype = table.dtype
    itemsize = jnp.dtype(dtype).itemsize
    scale = math.sqrt(D)
    # Output-block sublane multiple: 8 rows for 4-byte dtypes, 16 for bf16.
    min_block = max(8, 32 // itemsize)

    lead_shape = ids.shape
    flat = ids.reshape(-1).astype(jnp.int32)
    flat = jnp.clip(flat, 0, V - 1)        # out-of-range ids would become OOB DMAs
    n = int(flat.shape[0])

    if resident is None:
        # Small-vocab fast path: table comfortably fits every chip's VMEM
        # (even double-buffered on v7x's 64 MiB) and the one-hot matmul is cheap.
        resident = (V * D * itemsize <= resident_table_budget_bytes) and (V <= 2048)

    if resident:
        tps = _pick_block(n, tokens_per_step, min_block)
        n_pad = _round_up(n, tps)
        if n_pad != n:
            flat = jnp.pad(flat, (0, n_pad - n))
        ids_col = flat.reshape(n_pad, 1)

        # VMEM budget: table (assume 2x double-buffer) + double-buffered ids and
        # output blocks + headroom for the (T, V) one-hot intermediate.
        vmem_need = (2 * V * D * itemsize
                     + 2 * tps * D * itemsize
                     + 2 * tps * 128 * 4
                     + 2 * tps * max(V, 128) * 4
                     + (4 << 20))
        vmem_limit = int(min(max(vmem_need, 16 << 20), 32 << 20))

        cost = pl.CostEstimate(
            flops=int(n_pad) * int(D),
            transcendentals=0,
            bytes_accessed=int(V * D * itemsize + n_pad * 4 + n_pad * D * itemsize),
        )

        out = pl.pallas_call(
            partial(_embed_resident_kernel, scale=scale),
            out_shape=jax.ShapeDtypeStruct((n_pad, D), dtype),
            grid_spec=pl.GridSpec(
                grid=(n_pad // tps,),
                in_specs=[
                    pl.BlockSpec((tps, 1), lambda i: (i, 0)),     # token ids
                    pl.BlockSpec((V, D), lambda i: (0, 0)),       # resident table
                ],
                out_specs=pl.BlockSpec((tps, D), lambda i: (i, 0)),
            ),
            compiler_params=pltpu.CompilerParams(
                dimension_semantics=("parallel",),
                vmem_limit_bytes=vmem_limit,
            ),
            cost_estimate=cost,
        )(ids_col, table)
    else:
        rps = _pick_block(n, rows_per_step, min_block)
        n_pad = _round_up(n, rps)
        if n_pad != n:
            flat = jnp.pad(flat, (0, n_pad - n))
        # (V, 1, D) view so the (1, 1, D) gather block equals the full trailing dims.
        table3 = table.reshape(V, 1, D)

        in_specs = [
            pl.BlockSpec(
                (1, 1, D),
                (lambda i, ids_ref, t=t: (ids_ref[i * rps + t], 0, 0)),
            )
            for t in range(rps)
        ]
        out_spec = pl.BlockSpec((rps, D), lambda i, ids_ref: (i, 0))

        cost = pl.CostEstimate(
            flops=int(n_pad) * int(D),
            transcendentals=0,
            bytes_accessed=int(2 * n_pad * D * itemsize + n_pad * 4),
        )

        out = pl.pallas_call(
            partial(_embed_stream_kernel, rows_per_step=rps, scale=scale),
            out_shape=jax.ShapeDtypeStruct((n_pad, D), dtype),
            grid_spec=pltpu.PrefetchScalarGridSpec(
                num_scalar_prefetch=1,                 # ids land in SMEM
                grid=(n_pad // rps,),
                in_specs=in_specs,
                out_specs=out_spec,
            ),
            compiler_params=pltpu.CompilerParams(
                dimension_semantics=("parallel",),
            ),
            cost_estimate=cost,
        )(flat, *([table3] * rps))

    if n_pad != n:
        out = out[:n]
    return out.reshape(*lead_shape, D)


if __name__ == "__main__":
    B, S = 2, 8              # batch=2, seq=8
    D, V = 128, 64           # d_model lane-dense, small vocab

    key = jax.random.PRNGKey(0)
    k_tab, k_ids = jax.random.split(key)
    table = jax.random.normal(k_tab, (V, D), dtype=jnp.float32)   # nn.Embedding weight
    ids = jax.random.randint(k_ids, (B, S), 0, V, dtype=jnp.int32)

    # Pure-JAX reference: lut(x) * sqrt(d_model)
    ref = table[ids] * math.sqrt(D)

    # Fast path (resident table + one-hot MXU gather).
    out = jax.block_until_ready(embeddings(ids, table))
    assert out.shape == (B, S, D) and out.dtype == table.dtype
    assert jnp.allclose(out, ref, atol=1e-5, rtol=1e-5)

    # Streaming fallback path (data-dependent BlockSpec row gather).
    out2 = jax.block_until_ready(embeddings(ids, table, resident=False))
    assert out2.shape == (B, S, D) and out2.dtype == table.dtype
    assert jnp.allclose(out2, ref, atol=1e-5, rtol=1e-5)

    # bf16 table sanity (blocks are 16-sublane multiples; halves HBM traffic).
    table_bf = table.astype(jnp.bfloat16)
    out_bf = jax.block_until_ready(embeddings(ids, table_bf))
    ref_bf = (table_bf[ids].astype(jnp.float32) * math.sqrt(D)).astype(jnp.bfloat16)
    assert out_bf.dtype == jnp.bfloat16
    assert jnp.allclose(out_bf.astype(jnp.float32), ref_bf.astype(jnp.float32),
                        atol=1e-2, rtol=1e-2)

    print("KERNEL_OK")
</pallas_src>

<mosaic_0001>
module attributes {stable_mosaic.version = 11 : i64} {
  func.func @_embed_resident_kernel(%arg0: i32, %arg1: memref<8x1xi32, #tpu.memory_space<vmem>>, %arg2: memref<64x128xf32, #tpu.memory_space<vmem>>, %arg3: memref<8x128xf32, #tpu.memory_space<vmem>>) attributes {dimension_semantics = [#tpu.dimension_semantics<parallel>], iteration_bounds = array<i64: 2>, scalar_prefetch = 0 : i64, scratch_operands = 0 : i64, tpu.core_type = #tpu.core_type<tc>, window_params = [{transform_indices = @transform_0, window_bounds = array<i64: 8, 1>}, {pipeline_mode = #tpu.pipeline_mode<synchronous>, transform_indices = @transform_1, window_bounds = array<i64: 64, 128>}, {transform_indices = @transform_2, window_bounds = array<i64: 8, 128>}]} {
    %c0 = arith.constant 0 : index
    %c0_0 = arith.constant 0 : index
    %0 = vector.load %arg1[%c0, %c0_0] : memref<8x1xi32, #tpu.memory_space<vmem>>, vector<8x1xi32>
    %1 = tpu.iota {dimensions = array<i32: 1>} : vector<8x64xi32>
    %2 = vector.broadcast %0 : vector<8x1xi32> to vector<8x64xi32>
    %3 = arith.cmpi eq, %2, %1 : vector<8x64xi32>
    %4 = arith.extui %3 : vector<8x64xi1> to vector<8x64xi32>
    %5 = arith.sitofp %4 : vector<8x64xi32> to vector<8x64xf32>
    %c0_1 = arith.constant 0 : index
    %c0_2 = arith.constant 0 : index
    %6 = vector.load %arg2[%c0_1, %c0_2] : memref<64x128xf32, #tpu.memory_space<vmem>>, vector<64x128xf32>
    %cst = arith.constant dense<0.000000e+00> : vector<8x128xf32>
    %7 = tpu.matmul %5, %6, %cst {dimension_numbers = #tpu.dot_dimension_numbers<[1], [0], [0], [1], [0, 0, 1, 1], [], []>} : vector<8x64xf32>, vector<64x128xf32>, vector<8x128xf32> -> vector<8x128xf32>
    %cst_3 = arith.constant 11.3137083 : f32
    %8 = vector.broadcast %cst_3 : f32 to vector<8x128xf32>
    %9 = arith.mulf %7, %8 : vector<8x128xf32>
    %c0_4 = arith.constant 0 : index
    %c0_5 = arith.constant 0 : index
    %10 = vector.load %arg3[%c0_4, %c0_5] : memref<8x128xf32, #tpu.memory_space<vmem>>, vector<8x128xf32>
    tpu.vector_store %arg3[%c0_4, %c0_5], %9 {strides = array<i32>} : memref<8x128xf32, #tpu.memory_space<vmem>>, vector<8x128xf32>,
    return
  }
  func.func @transform_0(%arg0: i32) -> (i32, i32) {
    %c0_i32 = arith.constant 0 : i32
    %c0_i32_0 = arith.constant 0 : i32
    return %arg0, %c0_i32 : i32, i32
  }
  func.func @transform_1(%arg0: i32) -> (i32, i32) {
    %c0_i32 = arith.constant 0 : i32
    %c0_i32_0 = arith.constant 0 : i32
    %c0_i32_1 = arith.constant 0 : i32
    return %c0_i32, %c0_i32_0 : i32, i32
  }
  func.func @transform_2(%arg0: i32) -> (i32, i32) {
    %c0_i32 = arith.constant 0 : i32
    %c0_i32_0 = arith.constant 0 : i32
    return %arg0, %c0_i32 : i32, i32
  }
}

</mosaic_0001>

<llo_original>
// kernel: tpu_custom_call.1
$region0: #{tpu_custom_call.1}
  #allocation0 [shape = 'u32[]', space=smem, size = 0x4, offset = 0x4, fixed_abs, tag = 'smem constant byte address 0x4 - core index']
  #allocation1 [shape = 'u32[72,128]{1,0:T(1,128)}', space=vmem, size = 0x9000, scoped, tag = 'internal scratch']
  %s0 = inlined_call_operand.vmem [shape: s32[16,1], index: 0, kind: input, shape index: {}]
  %s1 = inlined_call_operand.hbm [shape: f32[64,128], index: 1, kind: input, shape index: {}]
  %s2 = inlined_call_operand.hbm [shape: f32[16,128], index: 2, kind: output, shape index: {}]
  %s3 = sld [smem:[#allocation0]]
  $region45: #{tpu_custom_call.1} parent=0
    _
  %s5 = ssub.s32 1, %s3
  %s6 = scalar_select 0, %s5, %s3
  $region1: #{tpu_custom_call.1} parent=0
    #allocation2 [shape = 'u8[32768]{0}', space=vmem, size = 0x8000, scoped, tag = 'input window, operand 1, single buffered']
    #allocation3 [shape = 's32[2]{0}', space=sflag, size = 0x8, scoped, tag = 'scoped memory for tpu_custom_call.1']
    #allocation4 [shape = 's32[2]{0}', space=sflag, size = 0x8, scoped, tag = 'scoped memory for tpu_custom_call.1']
    #allocation5 [shape = 'u8[8192]{0}', space=vmem, size = 0x2000, scoped, tag = 'output window, operand 0']
    %7 = vsyncpa [#allocation3], 0
    %8 = vsyncpa [#allocation4], 0
    %s9 = scalar_lea.sflag [#allocation4], 1
    %10 = vsyncpa %s9, 0
    loop: start=0, step=1, limit=4
    $region2: #{tpu_custom_call.1} parent=1 // loop_pre_header
      _
    $region3: #{tpu_custom_call.1} parent=1 // loop_header
      %s12 = sphi 0, %s16
      %p13 = scmp.ge.s32.totalorder %s12, 4
      %s22 = sphi 0, %s24
      %s25 = sphi 0, %s22
      %s26 = sphi 0, %s25
      %s42 = sphi 0, %s26
      %s46 = sphi 0, %s46
      %s48 = sphi 0, %s46
      %s49 = sphi 0, %s48
      %s63 = sphi 0, %s49
      %s69 = sphi 0, %s71
      %s72 = sphi 0, %s69
      %s73 = sphi 0, %s72
      %s89 = sphi 0, %s73
    $region4: #{tpu_custom_call.1} parent=1 // loop_header_branch
      %15 = sbr.rel (%p13) target = $region8
    $region5: #{tpu_custom_call.1} parent=1 // loop_body
      %s17 = ssub.s32 %s12, 1
      %s18 = ssub.s32 %s12, 2
      %s19 = sadd.s32 %s12, 1
      %s20 = ssub.s32 %s12, %s19
      %p21 = scmp.eq.s32.totalorder %s20, 0
      %s23 = sadd.s32 %s22, 1
      %s24 = scalar_select %p21, %s22, %s23
      %p27 = pneg %p21
      %p28 = scmp.eq.s32.totalorder %s12, 1
      %p29 = por %p27, %p28
      %p30 = scmp.ne.s32.totalorder %s22, %s25
      %p31 = scmp.eq.s32.totalorder %s12, 0
      %p32 = por %p30, %p31
      %p33 = scmp.ne.s32.totalorder %s22, %s25
      %p34 = scmp.eq.s32.totalorder %s17, 1
      %p35 = por %p33, %p34
      %p36 = scmp.ne.s32.totalorder %s25, %s26
      %p37 = scmp.eq.s32.totalorder %s17, 0
      %p38 = por %p36, %p37
      %p39 = scmp.ne.s32.totalorder %s25, %s26
      %p40 = scmp.eq.s32.totalorder %s18, 1
      %p41 = por %p39, %p40
      %p43 = scmp.ne.s32.totalorder %s26, %s42
      %p44 = scmp.eq.s32.totalorder %s18, 0
      %p45 = por %p43, %p44
      %s47 = sadd.s32 %s46, 1
      %p50 = scmp.eq.s32.totalorder %s12, 1
      %p51 = scmp.ne.s32.totalorder %s46, %s48
      %p52 = scmp.eq.s32.totalorder %s12, 0
      %p53 = por %p51, %p52
      %p54 = scmp.ne.s32.totalorder %s46, %s48
      %p55 = scmp.eq.s32.totalorder %s17, 1
      %p56 = por %p54, %p55
      %p57 = scmp.ne.s32.totalorder %s48, %s49
      %p58 = scmp.eq.s32.totalorder %s17, 0
      %p59 = por %p57, %p58
      %p60 = scmp.ne.s32.totalorder %s48, %s49
      %p61 = scmp.eq.s32.totalorder %s18, 1
      %p62 = por %p60, %p61
      %p64 = scmp.ne.s32.totalorder %s49, %s63
      %p65 = scmp.eq.s32.totalorder %s18, 0
      %p66 = por %p64, %p65
      %s67 = ssub.s32 %s12, %s19
      %p68 = scmp.eq.s32.totalorder %s67, 0
      %s70 = sadd.s32 %s69, 1
      %s71 = scalar_select %p68, %s69, %s70
      %p74 = pneg %p68
      %p75 = scmp.eq.s32.totalorder %s12, 1
      %p76 = por %p74, %p75
      %p77 = scmp.ne.s32.totalorder %s69, %s72
      %p78 = scmp.eq.s32.totalorder %s12, 0
      %p79 = por %p77, %p78
      %p80 = scmp.ne.s32.totalorder %s69, %s72
      %p81 = scmp.eq.s32.totalorder %s17, 1
      %p82 = por %p80, %p81
      %p83 = scmp.ne.s32.totalorder %s72, %s73
      %p84 = scmp.eq.s32.totalorder %s17, 0
      %p85 = por %p83, %p84
      %p86 = scmp.ne.s32.totalorder %s72, %s73
      %p87 = scmp.eq.s32.totalorder %s18, 1
      %p88 = por %p86, %p87
      %p90 = scmp.ne.s32.totalorder %s73, %s89
      %p91 = scmp.eq.s32.totalorder %s18, 0
      %p92 = por %p90, %p91
      %p93 = scmp.le.s32.totalorder 1, %s12
      %p94 = scmp.lt.s32.totalorder %s12, 3
      %p95 = pnand %p93, %p94
      %p96 = pneg %p95
      // Predicated region
      $region9: #{tpu_custom_call.1} parent=5 // pred_check
        _
      $region10: #{tpu_custom_call.1} parent=5 // pred_check_branch
        %98 = sbr.rel (%p95) target = $region12
      $region11: #{tpu_custom_call.1} parent=5 // pred_region
        %s99 = ssub.s32 %s12, 1
        // Predicated region
        $region13: #{tpu_custom_call.1} parent=11 // pred_check
          %p100 = pneg %p59
        $region14: #{tpu_custom_call.1} parent=11 // pred_check_branch
          %102 = sbr.rel (%p100) target = $region16
        $region15: #{tpu_custom_call.1} parent=11 // pred_region
          %104 = vsyncadd [#allocation3], 0
          %s105 = sshll.u32 %s1, 4
          %s106 = int_to_ptr.hbm [resolvable:$true] %s105
          %s107 = sshll.u32 [#allocation2], 4
          %s108 = int_to_ptr.vmem [resolvable:$true] %s107
          %113 = dma.hbm_to_vmem [thread:$0]  %s106, 1024, %s108, [#allocation3], 128, 128, 8
        $region16: #{tpu_custom_call.1} parent=11 // pred_fallthru
          _
      $region12: #{tpu_custom_call.1} parent=5 // pred_fallthru
        _
      %p114 = scmp.lt.s32.totalorder %s12, 2
      // Predicated region
      $region17: #{tpu_custom_call.1} parent=5 // pred_check
        %p115 = pneg %p114
      $region18: #{tpu_custom_call.1} parent=5 // pred_check_branch
        %117 = sbr.rel (%p115) target = $region20
      $region19: #{tpu_custom_call.1} parent=5 // pred_region
        // Predicated region
        $region21: #{tpu_custom_call.1} parent=19 // pred_check
          %p118 = pneg %p32
        $region22: #{tpu_custom_call.1} parent=19 // pred_check_branch
          %120 = sbr.rel (%p118) target = $region24
        $region23: #{tpu_custom_call.1} parent=19 // pred_region
          %p121 = scmp.lt.s32.totalorder %s12, 1
          %s122 = scalar_select %p121, %s12, 1
          %s123 = smul.addr %s122, 8
          %s124 = scalar_lea.vmem %s0, %s123
        $region24: #{tpu_custom_call.1} parent=19 // pred_fallthru
          _
      $region20: #{tpu_custom_call.1} parent=5 // pred_fallthru
        _
      %p125 = scmp.le.s32.totalorder 1, %s12
      %p126 = scmp.lt.s32.totalorder %s12, 3
      %p127 = pnand %p125, %p126
      %p128 = pneg %p127
      // Predicated region
      $region25: #{tpu_custom_call.1} parent=5 // pred_check
        _
      $region26: #{tpu_custom_call.1} parent=5 // pred_check_branch
        %130 = sbr.rel (%p127) target = $region28
      $region27: #{tpu_custom_call.1} parent=5 // pred_region
        %s131 = ssub.s32 %s12, 1
        // Predicated region
        $region29: #{tpu_custom_call.1} parent=27 // pred_check
          %p132 = pneg %p59
        $region30: #{tpu_custom_call.1} parent=27 // pred_check_branch
          %134 = sbr.rel (%p132) target = $region32
        $region31: #{tpu_custom_call.1} parent=27 // pred_region
          %136 = dma.done [#allocation3], 1024
        $region32: #{tpu_custom_call.1} parent=27 // pred_fallthru
          _
        %p137 = scmp.lt.s32.totalorder %s17, 1
        %s138 = scalar_select %p137, %s17, 1
        %s139 = smul.addr %s138, 8
        %s140 = scalar_lea.vmem %s0, %s139
        %p141 = pneg %p38
        %p142 = pneg %p35
        %p143 = pneg %p59
        %p144 = pneg %p56
        %p145 = pneg %p85
        %p146 = pneg %p82
        %s147 = sand.u32 %s72, 1
        %s148 = scalar_lea.sflag [#allocation4], %s147
        %s149 = sand.u32 %s72, 1
        %s150 = smul.addr %s149, 8
        %s151 = scalar_lea.vmem [#allocation5], %s150
        %p152 = scmp.lt.s32.totalorder %s17, 1
        %s153 = scalar_select %p152, %s17, 1
        %s154 = smul.addr %s153, 8
        %s155 = scalar_lea.vmem %s0, %s154
        %v156 = vld [vmem:[%s155] sm:$0xff]
        %v157 = vlaneseq
        %v158 = vand.u32 %v157, 127
        %159 = vset.pattern.permute.xlu0 0
        %160 = vperm.xlu0 %159, %v156
        %v161 = vpop.permute.xlu0 %160
        %vm162 = vcmp.eq.s32.totalorder %v161, %v158
        %v163 = vsel %vm162, 1, 0
        %v164 = vcvt.s32.f32 %v163
        %v165 = vld [vmem:[#allocation2] sm:$0xff]
        %v166 = vld [vmem:[#allocation2 + $0x8] sm:$0xff]
        %v167 = vld [vmem:[#allocation2 + $0x10] sm:$0xff]
        %v168 = vld [vmem:[#allocation2 + $0x18] sm:$0xff]
        %v169 = vld [vmem:[#allocation2 + $0x20] sm:$0xff]
        %v170 = vld [vmem:[#allocation2 + $0x28] sm:$0xff]
        %v171 = vld [vmem:[#allocation2 + $0x30] sm:$0xff]
        %v172 = vld [vmem:[#allocation2 + $0x38] sm:$0xff]
        %vm173 = vcmask 523264
        %v175 = vsel %vm173, %v164, 0
        %177 = vmatpush.msra.mxu0 0.0
        %178 = vmatpush.msra.mxu0 0.0
        %179 = vmatpush.msra.mxu0 0.0
        %180 = vmatpush.msra.mxu0 0.0
        %181 = vmatpush.msra.mxu0 0.0
        %182 = vmatpush.msra.mxu0 0.0
        %183 = vmatpush.msra.mxu0 0.0
        %184 = vmatpush.msra.mxu0 0.0
        %185 = vmatpush.msra.mxu0 %v172
        %186 = vmatpush.msra.mxu0 %v171
        %187 = vmatpush.msra.mxu0 %v170
        %188 = vmatpush.msra.mxu0 %v169
        %189 = vmatpush.msra.mxu0 %v168
        %190 = vmatpush.msra.mxu0 %v167
        %191 = vmatpush.msra.mxu0 %v166
        %192 = vmatpush.msra.mxu0 %v165
        %193 = vmatmul.f32.gmra.mxu0 %v175
        %v194 = vpop.f32.mrf.mxu0
        %v195 = vadd.f32 0.0, %v194
        %196 = vdwg.mxu0
        %v197 = vmul.f32 %v195, 11.313708
        %198 = vst [vmem:[%s151] sm:$0xff] %v197
        %s199 = sand.u32 %s72, 1
        %s200 = scalar_lea.sflag [#allocation4], %s199
        %s201 = sand.u32 %s72, 1
        %s202 = smul.addr %s201, 8
        %s203 = scalar_lea.vmem [#allocation5], %s202
        // Predicated region
        $region33: #{tpu_custom_call.1} parent=27 // pred_check
          %p204 = pneg %p82
        $region34: #{tpu_custom_call.1} parent=27 // pred_check_branch
          %206 = sbr.rel (%p204) target = $region36
        $region35: #{tpu_custom_call.1} parent=27 // pred_region
          %208 = vsyncadd %s200, 0
          %s209 = smul.addr %s17, 8
          %s210 = scalar_lea.hbm %s2, %s209
          %s212 = sshll.u32 %s203, 4
          %s213 = int_to_ptr.vmem [resolvable:$true] %s212
          %s214 = sshll.u32 %s210, 4
          %s215 = int_to_ptr.hbm [resolvable:$true] %s214
          %217 = dma.vmem_to_hbm [thread:$0]  %s213, 128, %s215, %s200
        $region36: #{tpu_custom_call.1} parent=27 // pred_fallthru
          _
      $region28: #{tpu_custom_call.1} parent=5 // pred_fallthru
        _
      %p218 = scmp.le.s32.totalorder 2, %s12
      // Predicated region
      $region37: #{tpu_custom_call.1} parent=5 // pred_check
        %p219 = pneg %p218
      $region38: #{tpu_custom_call.1} parent=5 // pred_check_branch
        %221 = sbr.rel (%p219) target = $region40
      $region39: #{tpu_custom_call.1} parent=5 // pred_region
        %s222 = ssub.s32 %s12, 2
        // Predicated region
        $region41: #{tpu_custom_call.1} parent=39 // pred_check
          %p223 = pneg %p88
        $region42: #{tpu_custom_call.1} parent=39 // pred_check_branch
          %225 = sbr.rel (%p223) target = $region44
        $region43: #{tpu_custom_call.1} parent=39 // pred_region
          %s226 = sand.u32 %s73, 1
          %s227 = scalar_lea.sflag [#allocation4], %s226
          %s228 = sand.u32 %s73, 1
          %s229 = smul.addr %s228, 8
          %s230 = scalar_lea.vmem [#allocation5], %s229
          %232 = dma.done %s227, 128
        $region44: #{tpu_custom_call.1} parent=39 // pred_fallthru
          _
      $region40: #{tpu_custom_call.1} parent=5 // pred_fallthru
        _
    $region6: #{tpu_custom_call.1} parent=1 // loop_footer
      %s16 = sadd.s32 1, %s12
    $region7: #{tpu_custom_call.1} parent=1 // loop_footer_branch
      %11 = sbr.rel target = $region3
    $region8: #{tpu_custom_call.1} parent=1 // loop_exit
      _
    %233 = vsyncpa [#allocation3], 1
    %s234 = scalar_lea.sflag [#allocation3], 1
    %235 = vsyncpa %s234, 1
    %236 = vsyncpa [#allocation4], 1
    %s237 = scalar_lea.sflag [#allocation4], 1
    %238 = vsyncpa %s237, 1

</llo_original>
